<compile_context>
chip_gen: v5e
topology: v5e:2x2
jax: 0.10.0
libtpu: 0.0.40
codegen_flags: <defaults>
</compile_context>

<pallas_src>
from functools import partial

import jax
import jax.numpy as jnp
from jax import lax
from jax.experimental import pallas as pl
from jax.experimental.pallas import tpu as pltpu

LEAKY_SLOPE = 0.1
BN_EPS = 1e-5


def _pick_vmem_limit(per_step_bytes):
    """Scoped-VMEM limit: keep the safe 32 MiB default for small working sets; raise
    it (bounded by ~3/4 of this chip's capacity, <= 100 MiB) only when blocks need it."""
    base = 32 * 1024 * 1024
    want = 4 * per_step_bytes + (4 << 20)   # double-buffered blocks + headroom
    if want <= base:
        return base
    try:
        cap = int(pltpu.get_tpu_info().vmem_capacity_bytes)
    except Exception:                        # conservative fallback
        cap = 64 * 1024 * 1024
    return max(base, min(want, (3 * cap) // 4, 100 * 1024 * 1024))


def conv_stats_kernel(w_ref, x_ref, conv_ref, sum_ref, m2_ref, *, KH, KW, OH, OW, Wp):
    """One image per grid step: tap-accumulated conv + packed bf16 store + BN partials.

    w_ref:    [KH*KW, C_out, C_in]  bf16, resident (constant index_map)
    x_ref:    [1, C_in, Hp*Wp]      bf16 padded image, flattened spatial dims
    conv_ref: [1, C_out, OH*OW]     bf16 packed conv output (junk lanes dropped)
    sum_ref:  [1, C_out, 1]         f32 per-image sum
    m2_ref:   [1, C_out, 1]         f32 per-image sum of squared deviations from the
                                    per-image mean (combined later via Chan's formula)
    """
    # Contiguous flat positions q = oh*Wp + ow covering every valid output position;
    # tap (i, j) of position q lives at flat index q + i*Wp + j of the padded image.
    Q = (OH - 1) * Wp + OW
    acc = None
    for i in range(KH):                       # KH*KW MXU matmuls, one VMEM image read
        for j in range(KW):
            off = i * Wp + j
            xs = x_ref[0, :, off:off + Q]                              # [C_in, Q] bf16
            c = jnp.dot(w_ref[i * KW + j], xs,                         # [C_out, Q] f32
                        preferred_element_type=jnp.float32)
            acc = c if acc is None else acc + c

    # Pack: each output row keeps its first OW lanes (ow < OW); the (Wp - OW) junk
    # lanes per row are dropped here in VMEM so HBM / pass 2 never see them.
    for oh in range(OH):
        conv_ref[0, :, oh * OW:(oh + 1) * OW] = (
            acc[:, oh * Wp:oh * Wp + OW].astype(jnp.bfloat16))

    # BN partial stats (f32) on exactly the bf16-rounded values pass 2 will normalize.
    pk = conv_ref[0].astype(jnp.float32)                                # [C_out, OH*OW]
    s1 = jnp.sum(pk, axis=1, keepdims=True)                             # [C_out, 1]
    mean_t = s1 * (1.0 / (OH * OW))
    d = pk - mean_t
    sum_ref[0] = s1
    m2_ref[0] = jnp.sum(d * d, axis=1, keepdims=True)


def bn_lrelu_kernel(conv_ref, scale_ref, shift_ref, o_ref):
    """Folded BatchNorm (one FMA) + LeakyReLU(0.1); f32 math, lane-dense blocks.

    conv_ref:  [1, C_out, OH*OW] bf16     scale/shift: [C_out, 1] f32
    o_ref:     [1, C_out, OH*OW] f32 (final NCHW layout up to a free reshape)
    """
    y = conv_ref[0].astype(jnp.float32) * scale_ref[...] + shift_ref[...]
    o_ref[0] = jnp.where(y >= 0, y, LEAKY_SLOPE * y)


def conv2d_norm_pool(x, weight, bias, gamma, beta, *, padding, stride):
    """x: [N, C_in, H, W] (NCHW). weight: [C_out, C_in, KH, KW]. Returns NCHW f32."""
    N, C_in, H, W = x.shape
    C_out, _, KH, KW = weight.shape
    if stride != 1:
        # TODO(synk): strided fused path not implemented (see module header).
        raise NotImplementedError("fused Conv2dNormPool kernel supports stride=1 only")
    OH = H + 2 * padding - KH + 1
    OW = W + 2 * padding - KW + 1
    Hp, Wp = H + 2 * padding, W + 2 * padding
    OHW = OH * OW
    R = N * OHW
    Q = (OH - 1) * Wp + OW

    # Conv bias is intentionally unused: training-mode BatchNorm subtracts the
    # per-channel batch mean immediately after the conv, cancelling it exactly.
    del bias

    # ---- glue (plain JAX, one pass over x): pad -> bf16 -> flatten spatial ----
    x_flat = jnp.pad(
        x.astype(jnp.bfloat16),
        ((0, 0), (0, 0), (padding, padding), (padding, padding)),
    ).reshape(N, C_in, Hp * Wp)
    # [C_out, C_in, KH, KW] -> [KH*KW, C_out, C_in]   (tap index t = i*KW + j)
    w_taps = jnp.transpose(weight, (2, 3, 0, 1)).reshape(
        KH * KW, C_out, C_in).astype(jnp.bfloat16)

    per_step_bytes = (C_in * Hp * Wp * 2 + KH * KW * C_out * C_in * 2
                      + C_out * OHW * 2 + C_out * Q * 4 + C_out * OHW * 4)
    cparams = pltpu.CompilerParams(
        dimension_semantics=("parallel",),
        vmem_limit_bytes=_pick_vmem_limit(per_step_bytes))

    # ---- pass 1: fused conv (KH*KW tap matmuls) + packed bf16 store + BN partials ----
    kern1 = partial(conv_stats_kernel, KH=KH, KW=KW, OH=OH, OW=OW, Wp=Wp)
    conv_t, s1, m2 = pl.pallas_call(
        kern1,
        out_shape=(
            jax.ShapeDtypeStruct((N, C_out, OHW), jnp.bfloat16),
            jax.ShapeDtypeStruct((N, C_out, 1), jnp.float32),
            jax.ShapeDtypeStruct((N, C_out, 1), jnp.float32),
        ),
        grid_spec=pltpu.PrefetchScalarGridSpec(
            num_scalar_prefetch=0,
            grid=(N,),
            in_specs=[
                pl.BlockSpec((KH * KW, C_out, C_in), lambda n: (0, 0, 0)),  # resident
                pl.BlockSpec((1, C_in, Hp * Wp), lambda n: (n, 0, 0)),      # one image
            ],
            out_specs=(
                pl.BlockSpec((1, C_out, OHW), lambda n: (n, 0, 0)),
                pl.BlockSpec((1, C_out, 1), lambda n: (n, 0, 0)),
                pl.BlockSpec((1, C_out, 1), lambda n: (n, 0, 0)),
            ),
        ),
        compiler_params=cparams,
    )(w_taps, x_flat)

    # ---- tiny cross-image combine (Chan's parallel variance) + fold BN params ----
    s1 = s1[:, :, 0]                                   # [N, C_out]
    m2 = m2[:, :, 0]                                   # [N, C_out]
    mean_img = s1 / OHW
    mean = jnp.sum(s1, axis=0) / R                     # [C_out]
    m2_tot = jnp.sum(m2, axis=0) + OHW * jnp.sum((mean_img - mean[None, :]) ** 2, axis=0)
    var = m2_tot / R                                   # biased (training-mode) variance
    inv_std = 1.0 / jnp.sqrt(var + BN_EPS)
    scale_vec = gamma.astype(jnp.float32) * inv_std
    shift_vec = beta.astype(jnp.float32) - mean * scale_vec
    scale = scale_vec.reshape(C_out, 1)
    shift = shift_vec.reshape(C_out, 1)

    # ---- pass 2: scale/shift FMA + LeakyReLU, writes the final layout directly ----
    y = pl.pallas_call(
        bn_lrelu_kernel,
        out_shape=jax.ShapeDtypeStruct((N, C_out, OHW), jnp.float32),
        grid_spec=pltpu.PrefetchScalarGridSpec(
            num_scalar_prefetch=0,
            grid=(N,),
            in_specs=[
                pl.BlockSpec((1, C_out, OHW), lambda n: (n, 0, 0)),
                pl.BlockSpec((C_out, 1), lambda n: (0, 0)),
                pl.BlockSpec((C_out, 1), lambda n: (0, 0)),
            ],
            out_specs=pl.BlockSpec((1, C_out, OHW), lambda n: (n, 0, 0)),
        ),
        compiler_params=cparams,
    )(conv_t, scale, shift)

    # Free row-major split (no transpose, no extra HBM pass).
    return y.reshape(N, C_out, OH, OW)


def reference(x, weight, bias, gamma, beta, *, padding, stride):
    """Pure-JAX f32 reference reproducing the PyTorch forward (training-mode BN).

    Includes the conv bias on purpose: it is cancelled by the BN mean subtraction,
    which is why the Pallas kernel drops it.
    """
    conv = lax.conv_general_dilated(
        x, weight, (stride, stride), [(padding, padding), (padding, padding)],
        dimension_numbers=("NCHW", "OIHW", "NCHW"),
    ) + bias[None, :, None, None]
    mean = jnp.mean(conv, axis=(0, 2, 3), keepdims=True)
    var = jnp.mean((conv - mean) ** 2, axis=(0, 2, 3), keepdims=True)
    y = (conv - mean) / jnp.sqrt(var + BN_EPS)
    y = y * gamma[None, :, None, None] + beta[None, :, None, None]
    return jnp.where(y >= 0, y, LEAKY_SLOPE * y)


if __name__ == "__main__":
    # Module hyperparams (small, consistent with the forward):
    in_channels, out_channels = 4, 8
    kernel_size, padding, stride = 3, 1, 1
    N, H, W = 2, 16, 16

    key = jax.random.PRNGKey(0)
    kx, kw, kb = jax.random.split(key, 3)

    x = jax.random.normal(kx, (N, in_channels, H, W), dtype=jnp.float32)

    # Deterministic parameter init (PyTorch-style uniform bound for conv; BN defaults).
    fan_in = in_channels * kernel_size * kernel_size
    bound = 1.0 / (fan_in ** 0.5)
    weight = jax.random.uniform(
        kw, (out_channels, in_channels, kernel_size, kernel_size),
        minval=-bound, maxval=bound, dtype=jnp.float32)
    bias = jax.random.uniform(kb, (out_channels,), minval=-bound, maxval=bound,
                              dtype=jnp.float32)
    gamma = jnp.ones((out_channels,), jnp.float32)   # BatchNorm2d default init
    beta = jnp.zeros((out_channels,), jnp.float32)

    out = conv2d_norm_pool(x, weight, bias, gamma, beta,
                           padding=padding, stride=stride)
    out = jax.block_until_ready(out)

    ref = reference(x, weight, bias, gamma, beta, padding=padding, stride=stride)
    assert out.shape == (N, out_channels, H, W), out.shape
    max_err = float(jnp.max(jnp.abs(out - ref)))
    # bf16 MXU operands + bf16 conv intermediate -> loosened tolerance (review note).
    assert jnp.allclose(out, ref, rtol=2e-2, atol=2e-2), max_err

    print("KERNEL_OK")
</pallas_src>

<mosaic_0001>
module attributes {stable_mosaic.version = 11 : i64} {
  func.func @conv_stats_kernel(%arg0: i32, %arg1: memref<9x8x4xbf16, #tpu.memory_space<vmem>>, %arg2: memref<1x4x324xbf16, #tpu.memory_space<vmem>>, %arg3: memref<1x8x256xbf16, #tpu.memory_space<vmem>>, %arg4: memref<1x8x1xf32, #tpu.memory_space<vmem>>, %arg5: memref<1x8x1xf32, #tpu.memory_space<vmem>>) attributes {dimension_semantics = [#tpu.dimension_semantics<parallel>], iteration_bounds = array<i64: 2>, scalar_prefetch = 0 : i64, scratch_operands = 0 : i64, tpu.core_type = #tpu.core_type<tc>, window_params = [{pipeline_mode = #tpu.pipeline_mode<synchronous>, transform_indices = @transform_0, window_bounds = array<i64: 9, 8, 4>}, {transform_indices = @transform_1, window_bounds = array<i64: 1, 4, 324>}, {transform_indices = @transform_2, window_bounds = array<i64: 1, 8, 256>}, {transform_indices = @transform_3, window_bounds = array<i64: 1, 8, 1>}, {transform_indices = @transform_4, window_bounds = array<i64: 1, 8, 1>}]} {
    %c0 = arith.constant 0 : index
    %c0_0 = arith.constant 0 : index
    %c0_1 = arith.constant 0 : index
    %0 = vector.load %arg2[%c0, %c0_0, %c0_1] : memref<1x4x324xbf16, #tpu.memory_space<vmem>>, vector<1x4x286xbf16>
    %1 = vector.shape_cast %0 : vector<1x4x286xbf16> to vector<4x286xbf16>
    %c0_2 = arith.constant 0 : index
    %c0_3 = arith.constant 0 : index
    %c0_4 = arith.constant 0 : index
    %2 = vector.load %arg1[%c0_2, %c0_3, %c0_4] : memref<9x8x4xbf16, #tpu.memory_space<vmem>>, vector<1x8x4xbf16>
    %3 = vector.shape_cast %2 : vector<1x8x4xbf16> to vector<8x4xbf16>
    %cst = arith.constant dense<0.000000e+00> : vector<8x286xf32>
    %4 = tpu.matmul %3, %1, %cst {dimension_numbers = #tpu.dot_dimension_numbers<[1], [0], [0], [1], [0, 0, 1, 1], [], []>} : vector<8x4xbf16>, vector<4x286xbf16>, vector<8x286xf32> -> vector<8x286xf32>
    %c0_5 = arith.constant 0 : index
    %c0_6 = arith.constant 0 : index
    %c1 = arith.constant 1 : index
    %5 = vector.load %arg2[%c0_5, %c0_6, %c1] : memref<1x4x324xbf16, #tpu.memory_space<vmem>>, vector<1x4x286xbf16>
    %6 = vector.shape_cast %5 : vector<1x4x286xbf16> to vector<4x286xbf16>
    %c1_7 = arith.constant 1 : index
    %c0_8 = arith.constant 0 : index
    %c0_9 = arith.constant 0 : index
    %7 = vector.load %arg1[%c1_7, %c0_8, %c0_9] : memref<9x8x4xbf16, #tpu.memory_space<vmem>>, vector<1x8x4xbf16>
    %8 = vector.shape_cast %7 : vector<1x8x4xbf16> to vector<8x4xbf16>
    %cst_10 = arith.constant dense<0.000000e+00> : vector<8x286xf32>
    %9 = tpu.matmul %8, %6, %cst_10 {dimension_numbers = #tpu.dot_dimension_numbers<[1], [0], [0], [1], [0, 0, 1, 1], [], []>} : vector<8x4xbf16>, vector<4x286xbf16>, vector<8x286xf32> -> vector<8x286xf32>
    %10 = arith.addf %4, %9 : vector<8x286xf32>
    %c0_11 = arith.constant 0 : index
    %c0_12 = arith.constant 0 : index
    %c2 = arith.constant 2 : index
    %11 = vector.load %arg2[%c0_11, %c0_12, %c2] : memref<1x4x324xbf16, #tpu.memory_space<vmem>>, vector<1x4x286xbf16>
    %12 = vector.shape_cast %11 : vector<1x4x286xbf16> to vector<4x286xbf16>
    %c2_13 = arith.constant 2 : index
    %c0_14 = arith.constant 0 : index
    %c0_15 = arith.constant 0 : index
    %13 = vector.load %arg1[%c2_13, %c0_14, %c0_15] : memref<9x8x4xbf16, #tpu.memory_space<vmem>>, vector<1x8x4xbf16>
    %14 = vector.shape_cast %13 : vector<1x8x4xbf16> to vector<8x4xbf16>
    %cst_16 = arith.constant dense<0.000000e+00> : vector<8x286xf32>
    %15 = tpu.matmul %14, %12, %cst_16 {dimension_numbers = #tpu.dot_dimension_numbers<[1], [0], [0], [1], [0, 0, 1, 1], [], []>} : vector<8x4xbf16>, vector<4x286xbf16>, vector<8x286xf32> -> vector<8x286xf32>
    %16 = arith.addf %10, %15 : vector<8x286xf32>
    %c0_17 = arith.constant 0 : index
    %c0_18 = arith.constant 0 : index
    %c18 = arith.constant 18 : index
    %17 = vector.load %arg2[%c0_17, %c0_18, %c18] : memref<1x4x324xbf16, #tpu.memory_space<vmem>>, vector<1x4x286xbf16>
    %18 = vector.shape_cast %17 : vector<1x4x286xbf16> to vector<4x286xbf16>
    %c3 = arith.constant 3 : index
    %c0_19 = arith.constant 0 : index
    %c0_20 = arith.constant 0 : index
    %19 = vector.load %arg1[%c3, %c0_19, %c0_20] : memref<9x8x4xbf16, #tpu.memory_space<vmem>>, vector<1x8x4xbf16>
    %20 = vector.shape_cast %19 : vector<1x8x4xbf16> to vector<8x4xbf16>
    %cst_21 = arith.constant dense<0.000000e+00> : vector<8x286xf32>
    %21 = tpu.matmul %20, %18, %cst_21 {dimension_numbers = #tpu.dot_dimension_numbers<[1], [0], [0], [1], [0, 0, 1, 1], [], []>} : vector<8x4xbf16>, vector<4x286xbf16>, vector<8x286xf32> -> vector<8x286xf32>
    %22 = arith.addf %16, %21 : vector<8x286xf32>
    %c0_22 = arith.constant 0 : index
    %c0_23 = arith.constant 0 : index
    %c19 = arith.constant 19 : index
    %23 = vector.load %arg2[%c0_22, %c0_23, %c19] : memref<1x4x324xbf16, #tpu.memory_space<vmem>>, vector<1x4x286xbf16>
    %24 = vector.shape_cast %23 : vector<1x4x286xbf16> to vector<4x286xbf16>
    %c4 = arith.constant 4 : index
    %c0_24 = arith.constant 0 : index
    %c0_25 = arith.constant 0 : index
    %25 = vector.load %arg1[%c4, %c0_24, %c0_25] : memref<9x8x4xbf16, #tpu.memory_space<vmem>>, vector<1x8x4xbf16>
    %26 = vector.shape_cast %25 : vector<1x8x4xbf16> to vector<8x4xbf16>
    %cst_26 = arith.constant dense<0.000000e+00> : vector<8x286xf32>
    %27 = tpu.matmul %26, %24, %cst_26 {dimension_numbers = #tpu.dot_dimension_numbers<[1], [0], [0], [1], [0, 0, 1, 1], [], []>} : vector<8x4xbf16>, vector<4x286xbf16>, vector<8x286xf32> -> vector<8x286xf32>
    %28 = arith.addf %22, %27 : vector<8x286xf32>
    %c0_27 = arith.constant 0 : index
    %c0_28 = arith.constant 0 : index
    %c20 = arith.constant 20 : index
    %29 = vector.load %arg2[%c0_27, %c0_28, %c20] : memref<1x4x324xbf16, #tpu.memory_space<vmem>>, vector<1x4x286xbf16>
    %30 = vector.shape_cast %29 : vector<1x4x286xbf16> to vector<4x286xbf16>
    %c5 = arith.constant 5 : index
    %c0_29 = arith.constant 0 : index
    %c0_30 = arith.constant 0 : index
    %31 = vector.load %arg1[%c5, %c0_29, %c0_30] : memref<9x8x4xbf16, #tpu.memory_space<vmem>>, vector<1x8x4xbf16>
    %32 = vector.shape_cast %31 : vector<1x8x4xbf16> to vector<8x4xbf16>
    %cst_31 = arith.constant dense<0.000000e+00> : vector<8x286xf32>
    %33 = tpu.matmul %32, %30, %cst_31 {dimension_numbers = #tpu.dot_dimension_numbers<[1], [0], [0], [1], [0, 0, 1, 1], [], []>} : vector<8x4xbf16>, vector<4x286xbf16>, vector<8x286xf32> -> vector<8x286xf32>
    %34 = arith.addf %28, %33 : vector<8x286xf32>
    %c0_32 = arith.constant 0 : index
    %c0_33 = arith.constant 0 : index
    %c36 = arith.constant 36 : index
    %35 = vector.load %arg2[%c0_32, %c0_33, %c36] : memref<1x4x324xbf16, #tpu.memory_space<vmem>>, vector<1x4x286xbf16>
    %36 = vector.shape_cast %35 : vector<1x4x286xbf16> to vector<4x286xbf16>
    %c6 = arith.constant 6 : index
    %c0_34 = arith.constant 0 : index
    %c0_35 = arith.constant 0 : index
    %37 = vector.load %arg1[%c6, %c0_34, %c0_35] : memref<9x8x4xbf16, #tpu.memory_space<vmem>>, vector<1x8x4xbf16>
    %38 = vector.shape_cast %37 : vector<1x8x4xbf16> to vector<8x4xbf16>
    %cst_36 = arith.constant dense<0.000000e+00> : vector<8x286xf32>
    %39 = tpu.matmul %38, %36, %cst_36 {dimension_numbers = #tpu.dot_dimension_numbers<[1], [0], [0], [1], [0, 0, 1, 1], [], []>} : vector<8x4xbf16>, vector<4x286xbf16>, vector<8x286xf32> -> vector<8x286xf32>
    %40 = arith.addf %34, %39 : vector<8x286xf32>
    %c0_37 = arith.constant 0 : index
    %c0_38 = arith.constant 0 : index
    %c37 = arith.constant 37 : index
    %41 = vector.load %arg2[%c0_37, %c0_38, %c37] : memref<1x4x324xbf16, #tpu.memory_space<vmem>>, vector<1x4x286xbf16>
    %42 = vector.shape_cast %41 : vector<1x4x286xbf16> to vector<4x286xbf16>
    %c7 = arith.constant 7 : index
    %c0_39 = arith.constant 0 : index
    %c0_40 = arith.constant 0 : index
    %43 = vector.load %arg1[%c7, %c0_39, %c0_40] : memref<9x8x4xbf16, #tpu.memory_space<vmem>>, vector<1x8x4xbf16>
    %44 = vector.shape_cast %43 : vector<1x8x4xbf16> to vector<8x4xbf16>
    %cst_41 = arith.constant dense<0.000000e+00> : vector<8x286xf32>
    %45 = tpu.matmul %44, %42, %cst_41 {dimension_numbers = #tpu.dot_dimension_numbers<[1], [0], [0], [1], [0, 0, 1, 1], [], []>} : vector<8x4xbf16>, vector<4x286xbf16>, vector<8x286xf32> -> vector<8x286xf32>
    %46 = arith.addf %40, %45 : vector<8x286xf32>
    %c0_42 = arith.constant 0 : index
    %c0_43 = arith.constant 0 : index
    %c38 = arith.constant 38 : index
    %47 = vector.load %arg2[%c0_42, %c0_43, %c38] : memref<1x4x324xbf16, #tpu.memory_space<vmem>>, vector<1x4x286xbf16>
    %48 = vector.shape_cast %47 : vector<1x4x286xbf16> to vector<4x286xbf16>
    %c8 = arith.constant 8 : index
    %c0_44 = arith.constant 0 : index
    %c0_45 = arith.constant 0 : index
    %49 = vector.load %arg1[%c8, %c0_44, %c0_45] : memref<9x8x4xbf16, #tpu.memory_space<vmem>>, vector<1x8x4xbf16>
    %50 = vector.shape_cast %49 : vector<1x8x4xbf16> to vector<8x4xbf16>
    %cst_46 = arith.constant dense<0.000000e+00> : vector<8x286xf32>
    %51 = tpu.matmul %50, %48, %cst_46 {dimension_numbers = #tpu.dot_dimension_numbers<[1], [0], [0], [1], [0, 0, 1, 1], [], []>} : vector<8x4xbf16>, vector<4x286xbf16>, vector<8x286xf32> -> vector<8x286xf32>
    %52 = arith.addf %46, %51 : vector<8x286xf32>
    %53 = vector.extract_strided_slice %52 {offsets = [0, 0], sizes = [8, 16], strides = [1, 1]} : vector<8x286xf32> to vector<8x16xf32>
    %54 = arith.truncf %53 : vector<8x16xf32> to vector<8x16xbf16>
    %c0_47 = arith.constant 0 : index
    %c0_48 = arith.constant 0 : index
    %c0_49 = arith.constant 0 : index
    %55 = vector.load %arg3[%c0_47, %c0_48, %c0_49] : memref<1x8x256xbf16, #tpu.memory_space<vmem>>, vector<1x8x16xbf16>
    %56 = vector.shape_cast %55 : vector<1x8x16xbf16> to vector<8x16xbf16>
    %57 = vector.shape_cast %54 : vector<8x16xbf16> to vector<1x8x16xbf16>
    tpu.vector_store %arg3[%c0_47, %c0_48, %c0_49], %57 {strides = array<i32>} : memref<1x8x256xbf16, #tpu.memory_space<vmem>>, vector<1x8x16xbf16>,
    %58 = vector.extract_strided_slice %52 {offsets = [0, 18], sizes = [8, 16], strides = [1, 1]} : vector<8x286xf32> to vector<8x16xf32>
    %59 = arith.truncf %58 : vector<8x16xf32> to vector<8x16xbf16>
    %c0_50 = arith.constant 0 : index
    %c0_51 = arith.constant 0 : index
    %c16 = arith.constant 16 : index
    %60 = vector.load %arg3[%c0_50, %c0_51, %c16] : memref<1x8x256xbf16, #tpu.memory_space<vmem>>, vector<1x8x16xbf16>
    %61 = vector.shape_cast %60 : vector<1x8x16xbf16> to vector<8x16xbf16>
    %62 = vector.shape_cast %59 : vector<8x16xbf16> to vector<1x8x16xbf16>
    tpu.vector_store %arg3[%c0_50, %c0_51, %c16], %62 {strides = array<i32>} : memref<1x8x256xbf16, #tpu.memory_space<vmem>>, vector<1x8x16xbf16>,
    %63 = vector.extract_strided_slice %52 {offsets = [0, 36], sizes = [8, 16], strides = [1, 1]} : vector<8x286xf32> to vector<8x16xf32>
    %64 = arith.truncf %63 : vector<8x16xf32> to vector<8x16xbf16>
    %c0_52 = arith.constant 0 : index
    %c0_53 = arith.constant 0 : index
    %c32 = arith.constant 32 : index
    %65 = vector.load %arg3[%c0_52, %c0_53, %c32] : memref<1x8x256xbf16, #tpu.memory_space<vmem>>, vector<1x8x16xbf16>
    %66 = vector.shape_cast %65 : vector<1x8x16xbf16> to vector<8x16xbf16>
    %67 = vector.shape_cast %64 : vector<8x16xbf16> to vector<1x8x16xbf16>
    tpu.vector_store %arg3[%c0_52, %c0_53, %c32], %67 {strides = array<i32>} : memref<1x8x256xbf16, #tpu.memory_space<vmem>>, vector<1x8x16xbf16>,
    %68 = vector.extract_strided_slice %52 {offsets = [0, 54], sizes = [8, 16], strides = [1, 1]} : vector<8x286xf32> to vector<8x16xf32>
    %69 = arith.truncf %68 : vector<8x16xf32> to vector<8x16xbf16>
    %c0_54 = arith.constant 0 : index
    %c0_55 = arith.constant 0 : index
    %c48 = arith.constant 48 : index
    %70 = vector.load %arg3[%c0_54, %c0_55, %c48] : memref<1x8x256xbf16, #tpu.memory_space<vmem>>, vector<1x8x16xbf16>
    %71 = vector.shape_cast %70 : vector<1x8x16xbf16> to vector<8x16xbf16>
    %72 = vector.shape_cast %69 : vector<8x16xbf16> to vector<1x8x16xbf16>
    tpu.vector_store %arg3[%c0_54, %c0_55, %c48], %72 {strides = array<i32>} : memref<1x8x256xbf16, #tpu.memory_space<vmem>>, vector<1x8x16xbf16>,
    %73 = vector.extract_strided_slice %52 {offsets = [0, 72], sizes = [8, 16], strides = [1, 1]} : vector<8x286xf32> to vector<8x16xf32>
    %74 = arith.truncf %73 : vector<8x16xf32> to vector<8x16xbf16>
    %c0_56 = arith.constant 0 : index
    %c0_57 = arith.constant 0 : index
    %c64 = arith.constant 64 : index
    %75 = vector.load %arg3[%c0_56, %c0_57, %c64] : memref<1x8x256xbf16, #tpu.memory_space<vmem>>, vector<1x8x16xbf16>
    %76 = vector.shape_cast %75 : vector<1x8x16xbf16> to vector<8x16xbf16>
    %77 = vector.shape_cast %74 : vector<8x16xbf16> to vector<1x8x16xbf16>
    tpu.vector_store %arg3[%c0_56, %c0_57, %c64], %77 {strides = array<i32>} : memref<1x8x256xbf16, #tpu.memory_space<vmem>>, vector<1x8x16xbf16>,
    %78 = vector.extract_strided_slice %52 {offsets = [0, 90], sizes = [8, 16], strides = [1, 1]} : vector<8x286xf32> to vector<8x16xf32>
    %79 = arith.truncf %78 : vector<8x16xf32> to vector<8x16xbf16>
    %c0_58 = arith.constant 0 : index
    %c0_59 = arith.constant 0 : index
    %c80 = arith.constant 80 : index
    %80 = vector.load %arg3[%c0_58, %c0_59, %c80] : memref<1x8x256xbf16, #tpu.memory_space<vmem>>, vector<1x8x16xbf16>
    %81 = vector.shape_cast %80 : vector<1x8x16xbf16> to vector<8x16xbf16>
    %82 = vector.shape_cast %79 : vector<8x16xbf16> to vector<1x8x16xbf16>
    tpu.vector_store %arg3[%c0_58, %c0_59, %c80], %82 {strides = array<i32>} : memref<1x8x256xbf16, #tpu.memory_space<vmem>>, vector<1x8x16xbf16>,
    %83 = vector.extract_strided_slice %52 {offsets = [0, 108], sizes = [8, 16], strides = [1, 1]} : vector<8x286xf32> to vector<8x16xf32>
    %84 = arith.truncf %83 : vector<8x16xf32> to vector<8x16xbf16>
    %c0_60 = arith.constant 0 : index
    %c0_61 = arith.constant 0 : index
    %c96 = arith.constant 96 : index
    %85 = vector.load %arg3[%c0_60, %c0_61, %c96] : memref<1x8x256xbf16, #tpu.memory_space<vmem>>, vector<1x8x16xbf16>
    %86 = vector.shape_cast %85 : vector<1x8x16xbf16> to vector<8x16xbf16>
    %87 = vector.shape_cast %84 : vector<8x16xbf16> to vector<1x8x16xbf16>
    tpu.vector_store %arg3[%c0_60, %c0_61, %c96], %87 {strides = array<i32>} : memref<1x8x256xbf16, #tpu.memory_space<vmem>>, vector<1x8x16xbf16>,
    %88 = vector.extract_strided_slice %52 {offsets = [0, 126], sizes = [8, 16], strides = [1, 1]} : vector<8x286xf32> to vector<8x16xf32>
    %89 = arith.truncf %88 : vector<8x16xf32> to vector<8x16xbf16>
    %c0_62 = arith.constant 0 : index
    %c0_63 = arith.constant 0 : index
    %c112 = arith.constant 112 : index
    %90 = vector.load %arg3[%c0_62, %c0_63, %c112] : memref<1x8x256xbf16, #tpu.memory_space<vmem>>, vector<1x8x16xbf16>
    %91 = vector.shape_cast %90 : vector<1x8x16xbf16> to vector<8x16xbf16>
    %92 = vector.shape_cast %89 : vector<8x16xbf16> to vector<1x8x16xbf16>
    tpu.vector_store %arg3[%c0_62, %c0_63, %c112], %92 {strides = array<i32>} : memref<1x8x256xbf16, #tpu.memory_space<vmem>>, vector<1x8x16xbf16>,
    %93 = vector.extract_strided_slice %52 {offsets = [0, 144], sizes = [8, 16], strides = [1, 1]} : vector<8x286xf32> to vector<8x16xf32>
    %94 = arith.truncf %93 : vector<8x16xf32> to vector<8x16xbf16>
    %c0_64 = arith.constant 0 : index
    %c0_65 = arith.constant 0 : index
    %c128 = arith.constant 128 : index
    %95 = vector.load %arg3[%c0_64, %c0_65, %c128] : memref<1x8x256xbf16, #tpu.memory_space<vmem>>, vector<1x8x16xbf16>
    %96 = vector.shape_cast %95 : vector<1x8x16xbf16> to vector<8x16xbf16>
    %97 = vector.shape_cast %94 : vector<8x16xbf16> to vector<1x8x16xbf16>
    tpu.vector_store %arg3[%c0_64, %c0_65, %c128], %97 {strides = array<i32>} : memref<1x8x256xbf16, #tpu.memory_space<vmem>>, vector<1x8x16xbf16>,
    %98 = vector.extract_strided_slice %52 {offsets = [0, 162], sizes = [8, 16], strides = [1, 1]} : vector<8x286xf32> to vector<8x16xf32>
    %99 = arith.truncf %98 : vector<8x16xf32> to vector<8x16xbf16>
    %c0_66 = arith.constant 0 : index
    %c0_67 = arith.constant 0 : index
    %c144 = arith.constant 144 : index
    %100 = vector.load %arg3[%c0_66, %c0_67, %c144] : memref<1x8x256xbf16, #tpu.memory_space<vmem>>, vector<1x8x16xbf16>
    %101 = vector.shape_cast %100 : vector<1x8x16xbf16> to vector<8x16xbf16>
    %102 = vector.shape_cast %99 : vector<8x16xbf16> to vector<1x8x16xbf16>
    tpu.vector_store %arg3[%c0_66, %c0_67, %c144], %102 {strides = array<i32>} : memref<1x8x256xbf16, #tpu.memory_space<vmem>>, vector<1x8x16xbf16>,
    %103 = vector.extract_strided_slice %52 {offsets = [0, 180], sizes = [8, 16], strides = [1, 1]} : vector<8x286xf32> to vector<8x16xf32>
    %104 = arith.truncf %103 : vector<8x16xf32> to vector<8x16xbf16>
    %c0_68 = arith.constant 0 : index
    %c0_69 = arith.constant 0 : index
    %c160 = arith.constant 160 : index
    %105 = vector.load %arg3[%c0_68, %c0_69, %c160] : memref<1x8x256xbf16, #tpu.memory_space<vmem>>, vector<1x8x16xbf16>
    %106 = vector.shape_cast %105 : vector<1x8x16xbf16> to vector<8x16xbf16>
    %107 = vector.shape_cast %104 : vector<8x16xbf16> to vector<1x8x16xbf16>
    tpu.vector_store %arg3[%c0_68, %c0_69, %c160], %107 {strides = array<i32>} : memref<1x8x256xbf16, #tpu.memory_space<vmem>>, vector<1x8x16xbf16>,
    %108 = vector.extract_strided_slice %52 {offsets = [0, 198], sizes = [8, 16], strides = [1, 1]} : vector<8x286xf32> to vector<8x16xf32>
    %109 = arith.truncf %108 : vector<8x16xf32> to vector<8x16xbf16>
    %c0_70 = arith.constant 0 : index
    %c0_71 = arith.constant 0 : index
    %c176 = arith.constant 176 : index
    %110 = vector.load %arg3[%c0_70, %c0_71, %c176] : memref<1x8x256xbf16, #tpu.memory_space<vmem>>, vector<1x8x16xbf16>
    %111 = vector.shape_cast %110 : vector<1x8x16xbf16> to vector<8x16xbf16>
    %112 = vector.shape_cast %109 : vector<8x16xbf16> to vector<1x8x16xbf16>
    tpu.vector_store %arg3[%c0_70, %c0_71, %c176], %112 {strides = array<i32>} : memref<1x8x256xbf16, #tpu.memory_space<vmem>>, vector<1x8x16xbf16>,
    %113 = vector.extract_strided_slice %52 {offsets = [0, 216], sizes = [8, 16], strides = [1, 1]} : vector<8x286xf32> to vector<8x16xf32>
    %114 = arith.truncf %113 : vector<8x16xf32> to vector<8x16xbf16>
    %c0_72 = arith.constant 0 : index
    %c0_73 = arith.constant 0 : index
    %c192 = arith.constant 192 : index
    %115 = vector.load %arg3[%c0_72, %c0_73, %c192] : memref<1x8x256xbf16, #tpu.memory_space<vmem>>, vector<1x8x16xbf16>
    %116 = vector.shape_cast %115 : vector<1x8x16xbf16> to vector<8x16xbf16>
    %117 = vector.shape_cast %114 : vector<8x16xbf16> to vector<1x8x16xbf16>
    tpu.vector_store %arg3[%c0_72, %c0_73, %c192], %117 {strides = array<i32>} : memref<1x8x256xbf16, #tpu.memory_space<vmem>>, vector<1x8x16xbf16>,
    %118 = vector.extract_strided_slice %52 {offsets = [0, 234], sizes = [8, 16], strides = [1, 1]} : vector<8x286xf32> to vector<8x16xf32>
    %119 = arith.truncf %118 : vector<8x16xf32> to vector<8x16xbf16>
    %c0_74 = arith.constant 0 : index
    %c0_75 = arith.constant 0 : index
    %c208 = arith.constant 208 : index
    %120 = vector.load %arg3[%c0_74, %c0_75, %c208] : memref<1x8x256xbf16, #tpu.memory_space<vmem>>, vector<1x8x16xbf16>
    %121 = vector.shape_cast %120 : vector<1x8x16xbf16> to vector<8x16xbf16>
    %122 = vector.shape_cast %119 : vector<8x16xbf16> to vector<1x8x16xbf16>
    tpu.vector_store %arg3[%c0_74, %c0_75, %c208], %122 {strides = array<i32>} : memref<1x8x256xbf16, #tpu.memory_space<vmem>>, vector<1x8x16xbf16>,
    %123 = vector.extract_strided_slice %52 {offsets = [0, 252], sizes = [8, 16], strides = [1, 1]} : vector<8x286xf32> to vector<8x16xf32>
    %124 = arith.truncf %123 : vector<8x16xf32> to vector<8x16xbf16>
    %c0_76 = arith.constant 0 : index
    %c0_77 = arith.constant 0 : index
    %c224 = arith.constant 224 : index
    %125 = vector.load %arg3[%c0_76, %c0_77, %c224] : memref<1x8x256xbf16, #tpu.memory_space<vmem>>, vector<1x8x16xbf16>
    %126 = vector.shape_cast %125 : vector<1x8x16xbf16> to vector<8x16xbf16>
    %127 = vector.shape_cast %124 : vector<8x16xbf16> to vector<1x8x16xbf16>
    tpu.vector_store %arg3[%c0_76, %c0_77, %c224], %127 {strides = array<i32>} : memref<1x8x256xbf16, #tpu.memory_space<vmem>>, vector<1x8x16xbf16>,
    %128 = vector.extract_strided_slice %52 {offsets = [0, 270], sizes = [8, 16], strides = [1, 1]} : vector<8x286xf32> to vector<8x16xf32>
    %129 = arith.truncf %128 : vector<8x16xf32> to vector<8x16xbf16>
    %c0_78 = arith.constant 0 : index
    %c0_79 = arith.constant 0 : index
    %c240 = arith.constant 240 : index
    %130 = vector.load %arg3[%c0_78, %c0_79, %c240] : memref<1x8x256xbf16, #tpu.memory_space<vmem>>, vector<1x8x16xbf16>
    %131 = vector.shape_cast %130 : vector<1x8x16xbf16> to vector<8x16xbf16>
    %132 = vector.shape_cast %129 : vector<8x16xbf16> to vector<1x8x16xbf16>
    tpu.vector_store %arg3[%c0_78, %c0_79, %c240], %132 {strides = array<i32>} : memref<1x8x256xbf16, #tpu.memory_space<vmem>>, vector<1x8x16xbf16>,
    %c0_80 = arith.constant 0 : index
    %c0_81 = arith.constant 0 : index
    %c0_82 = arith.constant 0 : index
    %133 = vector.load %arg3[%c0_80, %c0_81, %c0_82] : memref<1x8x256xbf16, #tpu.memory_space<vmem>>, vector<1x8x256xbf16>
    %134 = vector.shape_cast %133 : vector<1x8x256xbf16> to vector<8x256xbf16>
    %135 = arith.extf %134 : vector<8x256xbf16> to vector<8x256xf32>
    %cst_83 = arith.constant dense<0.000000e+00> : vector<8xf32>
    %136 = vector.multi_reduction <add>, %135, %cst_83 [1] : vector<8x256xf32> to vector<8xf32>
    %137 = vector.shape_cast %136 : vector<8xf32> to vector<8x1xf32>
    %cst_84 = arith.constant 3.906250e-03 : f32
    %138 = vector.broadcast %cst_84 : f32 to vector<8x1xf32>
    %139 = arith.mulf %137, %138 : vector<8x1xf32>
    %140 = vector.broadcast %139 : vector<8x1xf32> to vector<8x256xf32>
    %141 = arith.subf %135, %140 : vector<8x256xf32>
    %c0_85 = arith.constant 0 : index
    %c0_86 = arith.constant 0 : index
    %c0_87 = arith.constant 0 : index
    %142 = vector.load %arg4[%c0_85, %c0_86, %c0_87] : memref<1x8x1xf32, #tpu.memory_space<vmem>>, vector<1x8x1xf32>
    %143 = vector.shape_cast %142 : vector<1x8x1xf32> to vector<8x1xf32>
    %144 = vector.shape_cast %137 : vector<8x1xf32> to vector<1x8x1xf32>
    tpu.vector_store %arg4[%c0_85, %c0_86, %c0_87], %144 {strides = array<i32>} : memref<1x8x1xf32, #tpu.memory_space<vmem>>, vector<1x8x1xf32>,
    %145 = arith.mulf %141, %141 : vector<8x256xf32>
    %cst_88 = arith.constant dense<0.000000e+00> : vector<8xf32>
    %146 = vector.multi_reduction <add>, %145, %cst_88 [1] : vector<8x256xf32> to vector<8xf32>
    %147 = vector.shape_cast %146 : vector<8xf32> to vector<8x1xf32>
    %c0_89 = arith.constant 0 : index
    %c0_90 = arith.constant 0 : index
    %c0_91 = arith.constant 0 : index
    %148 = vector.load %arg5[%c0_89, %c0_90, %c0_91] : memref<1x8x1xf32, #tpu.memory_space<vmem>>, vector<1x8x1xf32>
    %149 = vector.shape_cast %148 : vector<1x8x1xf32> to vector<8x1xf32>
    %150 = vector.shape_cast %147 : vector<8x1xf32> to vector<1x8x1xf32>
    tpu.vector_store %arg5[%c0_89, %c0_90, %c0_91], %150 {strides = array<i32>} : memref<1x8x1xf32, #tpu.memory_space<vmem>>, vector<1x8x1xf32>,
    return
  }
  func.func @transform_0(%arg0: i32) -> (i32, i32, i32) {
    %c0_i32 = arith.constant 0 : i32
    %c0_i32_0 = arith.constant 0 : i32
    %c0_i32_1 = arith.constant 0 : i32
    %c0_i32_2 = arith.constant 0 : i32
    return %c0_i32, %c0_i32_0, %c0_i32_1 : i32, i32, i32
  }
  func.func @transform_1(%arg0: i32) -> (i32, i32, i32) {
    %c0_i32 = arith.constant 0 : i32
    %c0_i32_0 = arith.constant 0 : i32
    %c0_i32_1 = arith.constant 0 : i32
    return %arg0, %c0_i32, %c0_i32_0 : i32, i32, i32
  }
  func.func @transform_2(%arg0: i32) -> (i32, i32, i32) {
    %c0_i32 = arith.constant 0 : i32
    %c0_i32_0 = arith.constant 0 : i32
    %c0_i32_1 = arith.constant 0 : i32
    return %arg0, %c0_i32, %c0_i32_0 : i32, i32, i32
  }
  func.func @transform_3(%arg0: i32) -> (i32, i32, i32) {
    %c0_i32 = arith.constant 0 : i32
    %c0_i32_0 = arith.constant 0 : i32
    %c0_i32_1 = arith.constant 0 : i32
    return %arg0, %c0_i32, %c0_i32_0 : i32, i32, i32
  }
  func.func @transform_4(%arg0: i32) -> (i32, i32, i32) {
    %c0_i32 = arith.constant 0 : i32
    %c0_i32_0 = arith.constant 0 : i32
    %c0_i32_1 = arith.constant 0 : i32
    return %arg0, %c0_i32, %c0_i32_0 : i32, i32, i32
  }
}

</mosaic_0001>

<llo_original>
// kernel: tpu_custom_call.1
$region0: #{tpu_custom_call.1}
  #allocation0 [shape = 'u32[]', space=smem, size = 0x4, offset = 0x4, fixed_abs, tag = 'smem constant byte address 0x4 - core index']
  #allocation1 [shape = 'u32[72,128]{1,0:T(1,128)}', space=vmem, size = 0x9000, scoped, tag = 'internal scratch']
  %s0 = inlined_call_operand.vmem [shape: bf16[9,8,4], index: 0, kind: input, shape index: {}]
  %s1 = inlined_call_operand.vmem [shape: bf16[2,4,324], index: 1, kind: input, shape index: {}]
  %s2 = inlined_call_operand.hbm [shape: bf16[2,8,256], index: 2, kind: output, shape index: {0}]
  %s3 = inlined_call_operand.vmem [shape: f32[2,8,1], index: 3, kind: output, shape index: {1}]
  %s4 = inlined_call_operand.vmem [shape: f32[2,8,1], index: 4, kind: output, shape index: {2}]
  %5 = xla_tuple %s2, %s3, %s4
  %s6 = sld [smem:[#allocation0]]
  $region57: #{tpu_custom_call.1} parent=0
    _
  %s8 = ssub.s32 1, %s6
  %s9 = scalar_select 0, %s8, %s6
  $region1: #{tpu_custom_call.1} parent=0
    #allocation2 [shape = 'u8[8192]{0}', space=vmem, size = 0x2000, scoped, tag = 'output window, operand 0']
    #allocation3 [shape = 's32[2]{0}', space=sflag, size = 0x8, scoped, tag = 'scoped memory for tpu_custom_call.1']
    %10 = vsyncpa [#allocation3], 0
    %s11 = scalar_lea.sflag [#allocation3], 1
    %12 = vsyncpa %s11, 0
    loop: start=0, step=1, limit=4
    $region2: #{tpu_custom_call.1} parent=1 // loop_pre_header
      _
    $region3: #{tpu_custom_call.1} parent=1 // loop_header
      %s14 = sphi 0, %s18
      %p15 = scmp.ge.s32.totalorder %s14, 4
      %s22 = sphi 0, %s22
      %s24 = sphi 0, %s22
      %s25 = sphi 0, %s24
      %s39 = sphi 0, %s25
      %s45 = sphi 0, %s47
      %s48 = sphi 0, %s45
      %s49 = sphi 0, %s48
      %s65 = sphi 0, %s49
      %s71 = sphi 0, %s73
      %s74 = sphi 0, %s71
      %s75 = sphi 0, %s74
      %s91 = sphi 0, %s75
      %s97 = sphi 0, %s99
      %s100 = sphi 0, %s97
      %s101 = sphi 0, %s100
      %s117 = sphi 0, %s101
      %s123 = sphi 0, %s125
      %s126 = sphi 0, %s123
      %s127 = sphi 0, %s126
      %s143 = sphi 0, %s127
    $region4: #{tpu_custom_call.1} parent=1 // loop_header_branch
      %17 = sbr.rel (%p15) target = $region8
    $region5: #{tpu_custom_call.1} parent=1 // loop_body
      %s19 = ssub.s32 %s14, 1
      %s20 = ssub.s32 %s14, 2
      %s21 = sadd.s32 %s14, 1
      %s23 = sadd.s32 %s22, 1
      %p26 = scmp.eq.s32.totalorder %s14, 1
      %p27 = scmp.ne.s32.totalorder %s22, %s24
      %p28 = scmp.eq.s32.totalorder %s14, 0
      %p29 = por %p27, %p28
      %p30 = scmp.ne.s32.totalorder %s22, %s24
      %p31 = scmp.eq.s32.totalorder %s19, 1
      %p32 = por %p30, %p31
      %p33 = scmp.ne.s32.totalorder %s24, %s25
      %p34 = scmp.eq.s32.totalorder %s19, 0
      %p35 = por %p33, %p34
      %p36 = scmp.ne.s32.totalorder %s24, %s25
      %p37 = scmp.eq.s32.totalorder %s20, 1
      %p38 = por %p36, %p37
      %p40 = scmp.ne.s32.totalorder %s25, %s39
      %p41 = scmp.eq.s32.totalorder %s20, 0
      %p42 = por %p40, %p41
      %s43 = ssub.s32 %s14, %s21
      %p44 = scmp.eq.s32.totalorder %s43, 0
      %s46 = sadd.s32 %s45, 1
      %s47 = scalar_select %p44, %s45, %s46
      %p50 = pneg %p44
      %p51 = scmp.eq.s32.totalorder %s14, 1
      %p52 = por %p50, %p51
      %p53 = scmp.ne.s32.totalorder %s45, %s48
      %p54 = scmp.eq.s32.totalorder %s14, 0
      %p55 = por %p53, %p54
      %p56 = scmp.ne.s32.totalorder %s45, %s48
      %p57 = scmp.eq.s32.totalorder %s19, 1
      %p58 = por %p56, %p57
      %p59 = scmp.ne.s32.totalorder %s48, %s49
      %p60 = scmp.eq.s32.totalorder %s19, 0
      %p61 = por %p59, %p60
      %p62 = scmp.ne.s32.totalorder %s48, %s49
      %p63 = scmp.eq.s32.totalorder %s20, 1
      %p64 = por %p62, %p63
      %p66 = scmp.ne.s32.totalorder %s49, %s65
      %p67 = scmp.eq.s32.totalorder %s20, 0
      %p68 = por %p66, %p67
      %s69 = ssub.s32 %s14, %s21
      %p70 = scmp.eq.s32.totalorder %s69, 0
      %s72 = sadd.s32 %s71, 1
      %s73 = scalar_select %p70, %s71, %s72
      %p76 = pneg %p70
      %p77 = scmp.eq.s32.totalorder %s14, 1
      %p78 = por %p76, %p77
      %p79 = scmp.ne.s32.totalorder %s71, %s74
      %p80 = scmp.eq.s32.totalorder %s14, 0
      %p81 = por %p79, %p80
      %p82 = scmp.ne.s32.totalorder %s71, %s74
      %p83 = scmp.eq.s32.totalorder %s19, 1
      %p84 = por %p82, %p83
      %p85 = scmp.ne.s32.totalorder %s74, %s75
      %p86 = scmp.eq.s32.totalorder %s19, 0
      %p87 = por %p85, %p86
      %p88 = scmp.ne.s32.totalorder %s74, %s75
      %p89 = scmp.eq.s32.totalorder %s20, 1
      %p90 = por %p88, %p89
      %p92 = scmp.ne.s32.totalorder %s75, %s91
      %p93 = scmp.eq.s32.totalorder %s20, 0
      %p94 = por %p92, %p93
      %s95 = ssub.s32 %s14, %s21
      %p96 = scmp.eq.s32.totalorder %s95, 0
      %s98 = sadd.s32 %s97, 1
      %s99 = scalar_select %p96, %s97, %s98
      %p102 = pneg %p96
      %p103 = scmp.eq.s32.totalorder %s14, 1
      %p104 = por %p102, %p103
      %p105 = scmp.ne.s32.totalorder %s97, %s100
      %p106 = scmp.eq.s32.totalorder %s14, 0
      %p107 = por %p105, %p106
      %p108 = scmp.ne.s32.totalorder %s97, %s100
      %p109 = scmp.eq.s32.totalorder %s19, 1
      %p110 = por %p108, %p109
      %p111 = scmp.ne.s32.totalorder %s100, %s101
      %p112 = scmp.eq.s32.totalorder %s19, 0
      %p113 = por %p111, %p112
      %p114 = scmp.ne.s32.totalorder %s100, %s101
      %p115 = scmp.eq.s32.totalorder %s20, 1
      %p116 = por %p114, %p115
      %p118 = scmp.ne.s32.totalorder %s101, %s117
      %p119 = scmp.eq.s32.totalorder %s20, 0
      %p120 = por %p118, %p119
      %s121 = ssub.s32 %s14, %s21
      %p122 = scmp.eq.s32.totalorder %s121, 0
      %s124 = sadd.s32 %s123, 1
      %s125 = scalar_select %p122, %s123, %s124
      %p128 = pneg %p122
      %p129 = scmp.eq.s32.totalorder %s14, 1
      %p130 = por %p128, %p129
      %p131 = scmp.ne.s32.totalorder %s123, %s126
      %p132 = scmp.eq.s32.totalorder %s14, 0
      %p133 = por %p131, %p132
      %p134 = scmp.ne.s32.totalorder %s123, %s126
      %p135 = scmp.eq.s32.totalorder %s19, 1
      %p136 = por %p134, %p135
      %p137 = scmp.ne.s32.totalorder %s126, %s127
      %p138 = scmp.eq.s32.totalorder %s19, 0
      %p139 = por %p137, %p138
      %p140 = scmp.ne.s32.totalorder %s126, %s127
      %p141 = scmp.eq.s32.totalorder %s20, 1
      %p142 = por %p140, %p141
      %p144 = scmp.ne.s32.totalorder %s127, %s143
      %p145 = scmp.eq.s32.totalorder %s20, 0
      %p146 = por %p144, %p145
      %p147 = scmp.le.s32.totalorder 1, %s14
      %p148 = scmp.lt.s32.totalorder %s14, 3
      %p149 = pnand %p147, %p148
      %p150 = pneg %p149
      // Predicated region
      $region9: #{tpu_custom_call.1} parent=5 // pred_check
        _
      $region10: #{tpu_custom_call.1} parent=5 // pred_check_branch
        %152 = sbr.rel (%p149) target = $region12
      $region11: #{tpu_custom_call.1} parent=5 // pred_region
        %s153 = ssub.s32 %s14, 1
        // Predicated region
        $region13: #{tpu_custom_call.1} parent=11 // pred_check
          %p154 = pneg %p35
        $region14: #{tpu_custom_call.1} parent=11 // pred_check_branch
          %156 = sbr.rel (%p154) target = $region16
        $region15: #{tpu_custom_call.1} parent=11 // pred_region
          _
        $region16: #{tpu_custom_call.1} parent=11 // pred_fallthru
          _
      $region12: #{tpu_custom_call.1} parent=5 // pred_fallthru
        _
      %p157 = scmp.lt.s32.totalorder %s14, 2
      // Predicated region
      $region17: #{tpu_custom_call.1} parent=5 // pred_check
        %p158 = pneg %p157
      $region18: #{tpu_custom_call.1} parent=5 // pred_check_branch
        %160 = sbr.rel (%p158) target = $region20
      $region19: #{tpu_custom_call.1} parent=5 // pred_region
        // Predicated region
        $region21: #{tpu_custom_call.1} parent=19 // pred_check
          %p161 = pneg %p55
        $region22: #{tpu_custom_call.1} parent=19 // pred_check_branch
          %163 = sbr.rel (%p161) target = $region24
        $region23: #{tpu_custom_call.1} parent=19 // pred_region
          %p164 = scmp.lt.s32.totalorder %s14, 1
          %s165 = scalar_select %p164, %s14, 1
          %s166 = smul.addr %s165, 3
          %s167 = smul.addr %s166, 2
          %s168 = scalar_lea.vmem %s1, %s167
        $region24: #{tpu_custom_call.1} parent=19 // pred_fallthru
          _
      $region20: #{tpu_custom_call.1} parent=5 // pred_fallthru
        _
      %p169 = scmp.le.s32.totalorder 1, %s14
      %p170 = scmp.lt.s32.totalorder %s14, 3
      %p171 = pnand %p169, %p170
      %p172 = pneg %p171
      // Predicated region
      $region25: #{tpu_custom_call.1} parent=5 // pred_check
        _
      $region26: #{tpu_custom_call.1} parent=5 // pred_check_branch
        %174 = sbr.rel (%p171) target = $region28
      $region27: #{tpu_custom_call.1} parent=5 // pred_region
        %s175 = ssub.s32 %s14, 1
        %p176 = pneg %p35
        %p177 = pneg %p32
        %p178 = scmp.lt.s32.totalorder %s19, 1
        %s179 = scalar_select %p178, %s19, 1
        %s180 = smul.addr %s179, 3
        %s181 = smul.addr %s180, 2
        %s182 = scalar_lea.vmem %s1, %s181
        %p183 = pneg %p61
        %p184 = pneg %p58
        %p185 = pneg %p87
        %p186 = pneg %p84
        %s187 = sand.u32 %s74, 1
        %s188 = scalar_lea.sflag [#allocation3], %s187
        %s189 = sand.u32 %s74, 1
        %s190 = smul.addr %s189, 8
        %s191 = scalar_lea.vmem [#allocation2], %s190
        %p192 = pneg %p113
        %p193 = pneg %p110
        %p194 = scmp.lt.s32.totalorder %s19, 1
        %s195 = scalar_select %p194, %s19, 1
        %s196 = smul.addr %s195, 8
        %s197 = scalar_lea.vmem %s3, %s196
        %p198 = pneg %p139
        %p199 = pneg %p136
        %p200 = scmp.lt.s32.totalorder %s19, 1
        %s201 = scalar_select %p200, %s19, 1
        %s202 = smul.addr %s201, 8
        %s203 = scalar_lea.vmem %s4, %s202
        %p204 = scmp.lt.s32.totalorder %s19, 1
        %s205 = scalar_select %p204, %s19, 1
        %s206 = smul.addr %s205, 3
        %s207 = smul.addr %s206, 2
        %s208 = scalar_lea.vmem %s1, %s207
        %p209 = scmp.lt.s32.totalorder %s19, 1
        %s210 = scalar_select %p209, %s19, 1
        %s211 = smul.addr %s210, 8
        %s212 = scalar_lea.vmem %s3, %s211
        %p213 = scmp.lt.s32.totalorder %s19, 1
        %s214 = scalar_select %p213, %s19, 1
        %s215 = smul.addr %s214, 8
        %s216 = scalar_lea.vmem %s4, %s215
        %v218 = vld [vmem:[%s208] sm:$0x3f]
        %v219 = vld [vmem:[%s0] sm:$0xf]
        %s220 = scalar_lea.vmem %s0, 4
        %v221 = vld [vmem:[%s220] sm:$0xf]
        %223 = vst [vmem:[#allocation1] ss:$4 sm:$0xff] %v218
        %v224 = vld.sshfl [vmem:[#allocation1] sm:$0xff pattern:$0x73625140]
        %v226 = vld.sshfl [vmem:[#allocation1 + $0x8] sm:$0xff pattern:$0x73625140]
        %v228 = vld.sshfl [vmem:[#allocation1 + $0x10] sm:$0xff pattern:$0x73625140]
        %230 = vrot.lane.b32.xlu0 %v224, 127
        %v231 = vpop.permute.xlu0 %230
        %232 = vrot.lane.b32.xlu0 %v226, 127
        %v233 = vpop.permute.xlu0 %232
        %234 = vrot.lane.b32.xlu0 %v228, 127
        %v235 = vpop.permute.xlu0 %234
        %vm236 = vcmask 1039360
        %v237 = vsel %vm236, %v231, %v233
        %v238 = vsel %vm236, %v233, %v235
        %vm239 = vcmask 31744
        %v241 = vsel %vm239, %v221, 0
        %vm243 = vcmask 1041408
        %v245 = vsel %vm243, %v237, 0
        %v248 = vsel %vm243, %v238, 0
        %v251 = vsel %vm243, %v235, 0
        %253 = vmatpush.bf16.msra.mxu0 0
        %254 = vmatpush.bf16.msra.mxu0 0
        %255 = vmatpush.bf16.msra.mxu0 0
        %256 = vmatpush.bf16.msra.mxu0 0
        %257 = vmatpush.bf16.msra.mxu0 0
        %258 = vmatpush.bf16.msra.mxu0 0
        %259 = vmatpush.bf16.msra.mxu0 0
        %260 = vmatpush.bf16.msra.mxu0 %v245
        %261 = vmatmul.bf16.gmra.mxu0 %v241
        %v262 = vpop.f32.mrf.mxu0
        %v263 = vadd.f32 0.0, %v262
        %v264 = vpop.f32.mrf.mxu0
        %265 = vdwg.mxu0
        %266 = vmatpush.bf16.msra.mxu0 0
        %267 = vmatpush.bf16.msra.mxu0 0
        %268 = vmatpush.bf16.msra.mxu0 0
        %269 = vmatpush.bf16.msra.mxu0 0
        %270 = vmatpush.bf16.msra.mxu0 0
        %271 = vmatpush.bf16.msra.mxu0 0
        %272 = vmatpush.bf16.msra.mxu0 0
        %273 = vmatpush.bf16.msra.mxu0 %v248
        %274 = vmatmul.bf16.gmra.mxu0 %v241
        %v275 = vpop.f32.mrf.mxu0
        %v276 = vadd.f32 0.0, %v275
        %v277 = vpop.f32.mrf.mxu0
        %278 = vdwg.mxu0
        %279 = vmatpush.bf16.msra.mxu0 0
        %280 = vmatpush.bf16.msra.mxu0 0
        %281 = vmatpush.bf16.msra.mxu0 0
        %282 = vmatpush.bf16.msra.mxu0 0
        %283 = vmatpush.bf16.msra.mxu0 0
        %284 = vmatpush.bf16.msra.mxu0 0
        %285 = vmatpush.bf16.msra.mxu0 0
        %286 = vmatpush.bf16.msra.mxu0 %v251
        %287 = vmatmul.bf16.gmra.mxu0 %v241
        %v288 = vpop.f32.mrf.mxu0
        %v289 = vadd.f32 0.0, %v288
        %v290 = vpop.f32.mrf.mxu0
        %291 = vdwg.mxu0
        %292 = vst [vmem:[#allocation1] ss:$4 sm:$0xff] %v218
        %v293 = vld.sshfl [vmem:[#allocation1] sm:$0xff pattern:$0x73625140]
        %v294 = vld.sshfl [vmem:[#allocation1 + $0x8] sm:$0xff pattern:$0x73625140]
        %v295 = vld.sshfl [vmem:[#allocation1 + $0x10] sm:$0xff pattern:$0x73625140]
        %v297 = vsel %vm239, %v219, 0
        %v299 = vsel %vm243, %v293, 0
        %v301 = vsel %vm243, %v294, 0
        %v303 = vsel %vm243, %v295, 0
        %305 = vmatpush.bf16.msra.mxu0 0
        %306 = vmatpush.bf16.msra.mxu0 0
        %307 = vmatpush.bf16.msra.mxu0 0
        %308 = vmatpush.bf16.msra.mxu0 0
        %309 = vmatpush.bf16.msra.mxu0 0
        %310 = vmatpush.bf16.msra.mxu0 0
        %311 = vmatpush.bf16.msra.mxu0 0
        %312 = vmatpush.bf16.msra.mxu0 %v299
        %313 = vmatmul.bf16.gmra.mxu0 %v297
        %v314 = vpop.f32.mrf.mxu0
        %v315 = vadd.f32 %v263, %v314
        %v316 = vpop.f32.mrf.mxu0
        %317 = vdwg.mxu0
        %318 = vmatpush.bf16.msra.mxu0 0
        %319 = vmatpush.bf16.msra.mxu0 0
        %320 = vmatpush.bf16.msra.mxu0 0
        %321 = vmatpush.bf16.msra.mxu0 0
        %322 = vmatpush.bf16.msra.mxu0 0
        %323 = vmatpush.bf16.msra.mxu0 0
        %324 = vmatpush.bf16.msra.mxu0 0
        %325 = vmatpush.bf16.msra.mxu0 %v301
        %326 = vmatmul.bf16.gmra.mxu0 %v297
        %v327 = vpop.f32.mrf.mxu0
        %v328 = vadd.f32 %v276, %v327
        %v329 = vpop.f32.mrf.mxu0
        %330 = vdwg.mxu0
        %331 = vmatpush.bf16.msra.mxu0 0
        %332 = vmatpush.bf16.msra.mxu0 0
        %333 = vmatpush.bf16.msra.mxu0 0
        %334 = vmatpush.bf16.msra.mxu0 0
        %335 = vmatpush.bf16.msra.mxu0 0
        %336 = vmatpush.bf16.msra.mxu0 0
        %337 = vmatpush.bf16.msra.mxu0 0
        %338 = vmatpush.bf16.msra.mxu0 %v303
        %339 = vmatmul.bf16.gmra.mxu0 %v297
        %v340 = vpop.f32.mrf.mxu0
        %v341 = vadd.f32 %v289, %v340
        %v342 = vpop.f32.mrf.mxu0
        %343 = vdwg.mxu0
        %v344 = vld [vmem:[%s208] sm:$0x3f]
        %s345 = scalar_lea.vmem %s0, 8
        %v346 = vld [vmem:[%s345] sm:$0xf]
        %348 = vst [vmem:[#allocation1] ss:$4 sm:$0xff] %v344
        %v349 = vld.sshfl [vmem:[#allocation1] sm:$0xff pattern:$0x73625140]
        %v351 = vld.sshfl [vmem:[#allocation1 + $0x8] sm:$0xff pattern:$0x73625140]
        %v353 = vld.sshfl [vmem:[#allocation1 + $0x10] sm:$0xff pattern:$0x73625140]
        %355 = vrot.lane.b32.xlu0 %v349, 126
        %v356 = vpop.permute.xlu0 %355
        %357 = vrot.lane.b32.xlu0 %v351, 126
        %v358 = vpop.permute.xlu0 %357
        %359 = vrot.lane.b32.xlu0 %v353, 126
        %v360 = vpop.permute.xlu0 %359
        %vm361 = vcmask 1031168
        %v362 = vsel %vm361, %v356, %v358
        %v363 = vsel %vm361, %v358, %v360
        %v365 = vsel %vm239, %v346, 0
        %v368 = vsel %vm243, %v362, 0
        %v371 = vsel %vm243, %v363, 0
        %v374 = vsel %vm243, %v360, 0
        %376 = vmatpush.bf16.msra.mxu0 0
        %377 = vmatpush.bf16.msra.mxu0 0
        %378 = vmatpush.bf16.msra.mxu0 0
        %379 = vmatpush.bf16.msra.mxu0 0
        %380 = vmatpush.bf16.msra.mxu0 0
        %381 = vmatpush.bf16.msra.mxu0 0
        %382 = vmatpush.bf16.msra.mxu0 0
        %383 = vmatpush.bf16.msra.mxu0 %v368
        %384 = vmatmul.bf16.gmra.mxu0 %v365
        %v385 = vpop.f32.mrf.mxu0
        %v386 = vadd.f32 0.0, %v385
        %v387 = vpop.f32.mrf.mxu0
        %388 = vdwg.mxu0
        %389 = vmatpush.bf16.msra.mxu0 0
        %390 = vmatpush.bf16.msra.mxu0 0
        %391 = vmatpush.bf16.msra.mxu0 0
        %392 = vmatpush.bf16.msra.mxu0 0
        %393 = vmatpush.bf16.msra.mxu0 0
        %394 = vmatpush.bf16.msra.mxu0 0
        %395 = vmatpush.bf16.msra.mxu0 0
        %396 = vmatpush.bf16.msra.mxu0 %v371
        %397 = vmatmul.bf16.gmra.mxu0 %v365
        %v398 = vpop.f32.mrf.mxu0
        %v399 = vadd.f32 0.0, %v398
        %v400 = vpop.f32.mrf.mxu0
        %401 = vdwg.mxu0
        %402 = vmatpush.bf16.msra.mxu0 0
        %403 = vmatpush.bf16.msra.mxu0 0
        %404 = vmatpush.bf16.msra.mxu0 0
        %405 = vmatpush.bf16.msra.mxu0 0
        %406 = vmatpush.bf16.msra.mxu0 0
        %407 = vmatpush.bf16.msra.mxu0 0
        %408 = vmatpush.bf16.msra.mxu0 0
        %409 = vmatpush.bf16.msra.mxu0 %v374
        %410 = vmatmul.bf16.gmra.mxu0 %v365
        %v411 = vpop.f32.mrf.mxu0
        %v412 = vadd.f32 0.0, %v411
        %v413 = vpop.f32.mrf.mxu0
        %414 = vdwg.mxu0
        %v415 = vadd.f32 %v315, %v386
        %v416 = vadd.f32 %v328, %v399
        %v417 = vadd.f32 %v341, %v412
        %v418 = vld [vmem:[%s208] sm:$0x3f]
        %s419 = scalar_lea.vmem %s0, 12
        %v420 = vld [vmem:[%s419] sm:$0xf]
        %422 = vst [vmem:[#allocation1] ss:$4 sm:$0xff] %v418
        %v423 = vld.sshfl [vmem:[#allocation1] sm:$0xff pattern:$0x73625140]
        %v425 = vld.sshfl [vmem:[#allocation1 + $0x8] sm:$0xff pattern:$0x73625140]
        %v427 = vld.sshfl [vmem:[#allocation1 + $0x10] sm:$0xff pattern:$0x73625140]
        %429 = vrot.lane.b32.xlu0 %v423, 110
        %v430 = vpop.permute.xlu0 %429
        %431 = vrot.lane.b32.xlu0 %v425, 110
        %v432 = vpop.permute.xlu0 %431
        %433 = vrot.lane.b32.xlu0 %v427, 110
        %v434 = vpop.permute.xlu0 %433
        %vm435 = vcmask 900096
        %v436 = vsel %vm435, %v430, %v432
        %v437 = vsel %vm435, %v432, %v434
        %v439 = vsel %vm239, %v420, 0
        %v442 = vsel %vm243, %v436, 0
        %v445 = vsel %vm243, %v437, 0
        %v448 = vsel %vm243, %v434, 0
        %450 = vmatpush.bf16.msra.mxu0 0
        %451 = vmatpush.bf16.msra.mxu0 0
        %452 = vmatpush.bf16.msra.mxu0 0
        %453 = vmatpush.bf16.msra.mxu0 0
        %454 = vmatpush.bf16.msra.mxu0 0
        %455 = vmatpush.bf16.msra.mxu0 0
        %456 = vmatpush.bf16.msra.mxu0 0
        %457 = vmatpush.bf16.msra.mxu0 %v442
        %458 = vmatmul.bf16.gmra.mxu0 %v439
        %v459 = vpop.f32.mrf.mxu0
        %v460 = vadd.f32 0.0, %v459
        %v461 = vpop.f32.mrf.mxu0
        %462 = vdwg.mxu0
        %463 = vmatpush.bf16.msra.mxu0 0
        %464 = vmatpush.bf16.msra.mxu0 0
        %465 = vmatpush.bf16.msra.mxu0 0
        %466 = vmatpush.bf16.msra.mxu0 0
        %467 = vmatpush.bf16.msra.mxu0 0
        %468 = vmatpush.bf16.msra.mxu0 0
        %469 = vmatpush.bf16.msra.mxu0 0
        %470 = vmatpush.bf16.msra.mxu0 %v445
        %471 = vmatmul.bf16.gmra.mxu0 %v439
        %v472 = vpop.f32.mrf.mxu0
        %v473 = vadd.f32 0.0, %v472
        %v474 = vpop.f32.mrf.mxu0
        %475 = vdwg.mxu0
        %476 = vmatpush.bf16.msra.mxu0 0
        %477 = vmatpush.bf16.msra.mxu0 0
        %478 = vmatpush.bf16.msra.mxu0 0
        %479 = vmatpush.bf16.msra.mxu0 0
        %480 = vmatpush.bf16.msra.mxu0 0
        %481 = vmatpush.bf16.msra.mxu0 0
        %482 = vmatpush.bf16.msra.mxu0 0
        %483 = vmatpush.bf16.msra.mxu0 %v448
        %484 = vmatmul.bf16.gmra.mxu0 %v439
        %v485 = vpop.f32.mrf.mxu0
        %v486 = vadd.f32 0.0, %v485
        %v487 = vpop.f32.mrf.mxu0
        %488 = vdwg.mxu0
        %v489 = vadd.f32 %v415, %v460
        %v490 = vadd.f32 %v416, %v473
        %v491 = vadd.f32 %v417, %v486
        %v492 = vld [vmem:[%s208] sm:$0x3f]
        %s493 = scalar_lea.vmem %s0, 16
        %v494 = vld [vmem:[%s493] sm:$0xf]
        %496 = vst [vmem:[#allocation1] ss:$4 sm:$0xff] %v492
        %v497 = vld.sshfl [vmem:[#allocation1] sm:$0xff pattern:$0x73625140]
        %v499 = vld.sshfl [vmem:[#allocation1 + $0x8] sm:$0xff pattern:$0x73625140]
        %v501 = vld.sshfl [vmem:[#allocation1 + $0x10] sm:$0xff pattern:$0x73625140]
        %503 = vrot.lane.b32.xlu0 %v497, 109
        %v504 = vpop.permute.xlu0 %503
        %505 = vrot.lane.b32.xlu0 %v499, 109
        %v506 = vpop.permute.xlu0 %505
        %507 = vrot.lane.b32.xlu0 %v501, 109
        %v508 = vpop.permute.xlu0 %507
        %vm509 = vcmask 891904
        %v510 = vsel %vm509, %v504, %v506
        %v511 = vsel %vm509, %v506, %v508
        %v513 = vsel %vm239, %v494, 0
        %v516 = vsel %vm243, %v510, 0
        %v519 = vsel %vm243, %v511, 0
        %v522 = vsel %vm243, %v508, 0
        %524 = vmatpush.bf16.msra.mxu0 0
        %525 = vmatpush.bf16.msra.mxu0 0
        %526 = vmatpush.bf16.msra.mxu0 0
        %527 = vmatpush.bf16.msra.mxu0 0
        %528 = vmatpush.bf16.msra.mxu0 0
        %529 = vmatpush.bf16.msra.mxu0 0
        %530 = vmatpush.bf16.msra.mxu0 0
        %531 = vmatpush.bf16.msra.mxu0 %v516
        %532 = vmatmul.bf16.gmra.mxu0 %v513
        %v533 = vpop.f32.mrf.mxu0
        %v534 = vadd.f32 0.0, %v533
        %v535 = vpop.f32.mrf.mxu0
        %536 = vdwg.mxu0
        %537 = vmatpush.bf16.msra.mxu0 0
        %538 = vmatpush.bf16.msra.mxu0 0
        %539 = vmatpush.bf16.msra.mxu0 0
        %540 = vmatpush.bf16.msra.mxu0 0
        %541 = vmatpush.bf16.msra.mxu0 0
        %542 = vmatpush.bf16.msra.mxu0 0
        %543 = vmatpush.bf16.msra.mxu0 0
        %544 = vmatpush.bf16.msra.mxu0 %v519
        %545 = vmatmul.bf16.gmra.mxu0 %v513
        %v546 = vpop.f32.mrf.mxu0
        %v547 = vadd.f32 0.0, %v546
        %v548 = vpop.f32.mrf.mxu0
        %549 = vdwg.mxu0
        %550 = vmatpush.bf16.msra.mxu0 0
        %551 = vmatpush.bf16.msra.mxu0 0
        %552 = vmatpush.bf16.msra.mxu0 0
        %553 = vmatpush.bf16.msra.mxu0 0
        %554 = vmatpush.bf16.msra.mxu0 0
        %555 = vmatpush.bf16.msra.mxu0 0
        %556 = vmatpush.bf16.msra.mxu0 0
        %557 = vmatpush.bf16.msra.mxu0 %v522
        %558 = vmatmul.bf16.gmra.mxu0 %v513
        %v559 = vpop.f32.mrf.mxu0
        %v560 = vadd.f32 0.0, %v559
        %v561 = vpop.f32.mrf.mxu0
        %562 = vdwg.mxu0
        %v563 = vadd.f32 %v489, %v534
        %v564 = vadd.f32 %v490, %v547
        %v565 = vadd.f32 %v491, %v560
        %v566 = vld [vmem:[%s208] sm:$0x3f]
        %s567 = scalar_lea.vmem %s0, 20
        %v568 = vld [vmem:[%s567] sm:$0xf]
        %570 = vst [vmem:[#allocation1] ss:$4 sm:$0xff] %v566
        %v571 = vld.sshfl [vmem:[#allocation1] sm:$0xff pattern:$0x73625140]
        %v573 = vld.sshfl [vmem:[#allocation1 + $0x8] sm:$0xff pattern:$0x73625140]
        %v575 = vld.sshfl [vmem:[#allocation1 + $0x10] sm:$0xff pattern:$0x73625140]
        %577 = vrot.lane.b32.xlu0 %v571, 108
        %v578 = vpop.permute.xlu0 %577
        %579 = vrot.lane.b32.xlu0 %v573, 108
        %v580 = vpop.permute.xlu0 %579
        %581 = vrot.lane.b32.xlu0 %v575, 108
        %v582 = vpop.permute.xlu0 %581
        %vm583 = vcmask 883712
        %v584 = vsel %vm583, %v578, %v580
        %v585 = vsel %vm583, %v580, %v582
        %v587 = vsel %vm239, %v568, 0
        %v590 = vsel %vm243, %v584, 0
        %v593 = vsel %vm243, %v585, 0
        %v596 = vsel %vm243, %v582, 0
        %598 = vmatpush.bf16.msra.mxu0 0
        %599 = vmatpush.bf16.msra.mxu0 0
        %600 = vmatpush.bf16.msra.mxu0 0
        %601 = vmatpush.bf16.msra.mxu0 0
        %602 = vmatpush.bf16.msra.mxu0 0
        %603 = vmatpush.bf16.msra.mxu0 0
        %604 = vmatpush.bf16.msra.mxu0 0
        %605 = vmatpush.bf16.msra.mxu0 %v590
        %606 = vmatmul.bf16.gmra.mxu0 %v587
        %v607 = vpop.f32.mrf.mxu0
        %v608 = vadd.f32 0.0, %v607
        %v609 = vpop.f32.mrf.mxu0
        %610 = vdwg.mxu0
        %611 = vmatpush.bf16.msra.mxu0 0
        %612 = vmatpush.bf16.msra.mxu0 0
        %613 = vmatpush.bf16.msra.mxu0 0
        %614 = vmatpush.bf16.msra.mxu0 0
        %615 = vmatpush.bf16.msra.mxu0 0
        %616 = vmatpush.bf16.msra.mxu0 0
        %617 = vmatpush.bf16.msra.mxu0 0
        %618 = vmatpush.bf16.msra.mxu0 %v593
        %619 = vmatmul.bf16.gmra.mxu0 %v587
        %v620 = vpop.f32.mrf.mxu0
        %v621 = vadd.f32 0.0, %v620
        %v622 = vpop.f32.mrf.mxu0
        %623 = vdwg.mxu0
        %624 = vmatpush.bf16.msra.mxu0 0
        %625 = vmatpush.bf16.msra.mxu0 0
        %626 = vmatpush.bf16.msra.mxu0 0
        %627 = vmatpush.bf16.msra.mxu0 0
        %628 = vmatpush.bf16.msra.mxu0 0
        %629 = vmatpush.bf16.msra.mxu0 0
        %630 = vmatpush.bf16.msra.mxu0 0
        %631 = vmatpush.bf16.msra.mxu0 %v596
        %632 = vmatmul.bf16.gmra.mxu0 %v587
        %v633 = vpop.f32.mrf.mxu0
        %v634 = vadd.f32 0.0, %v633
        %v635 = vpop.f32.mrf.mxu0
        %636 = vdwg.mxu0
        %v637 = vadd.f32 %v563, %v608
        %v638 = vadd.f32 %v564, %v621
        %v639 = vadd.f32 %v565, %v634
        %v640 = vld [vmem:[%s208] sm:$0x3f]
        %s641 = scalar_lea.vmem %s0, 24
        %v642 = vld [vmem:[%s641] sm:$0xf]
        %644 = vst [vmem:[#allocation1] ss:$4 sm:$0xff] %v640
        %v645 = vld.sshfl [vmem:[#allocation1] sm:$0xff pattern:$0x73625140]
        %v647 = vld.sshfl [vmem:[#allocation1 + $0x8] sm:$0xff pattern:$0x73625140]
        %v649 = vld.sshfl [vmem:[#allocation1 + $0x10] sm:$0xff pattern:$0x73625140]
        %651 = vrot.lane.b32.xlu0 %v645, 92
        %v652 = vpop.permute.xlu0 %651
        %653 = vrot.lane.b32.xlu0 %v647, 92
        %v654 = vpop.permute.xlu0 %653
        %655 = vrot.lane.b32.xlu0 %v649, 92
        %v656 = vpop.permute.xlu0 %655
        %vm657 = vcmask 752640
        %v658 = vsel %vm657, %v652, %v654
        %v659 = vsel %vm657, %v654, %v656
        %v661 = vsel %vm239, %v642, 0
        %v664 = vsel %vm243, %v658, 0
        %v667 = vsel %vm243, %v659, 0
        %v670 = vsel %vm243, %v656, 0
        %672 = vmatpush.bf16.msra.mxu0 0
        %673 = vmatpush.bf16.msra.mxu0 0
        %674 = vmatpush.bf16.msra.mxu0 0
        %675 = vmatpush.bf16.msra.mxu0 0
        %676 = vmatpush.bf16.msra.mxu0 0
        %677 = vmatpush.bf16.msra.mxu0 0
        %678 = vmatpush.bf16.msra.mxu0 0
        %679 = vmatpush.bf16.msra.mxu0 %v664
        %680 = vmatmul.bf16.gmra.mxu0 %v661
        %v681 = vpop.f32.mrf.mxu0
        %v682 = vadd.f32 0.0, %v681
        %v683 = vpop.f32.mrf.mxu0
        %684 = vdwg.mxu0
        %685 = vmatpush.bf16.msra.mxu0 0
        %686 = vmatpush.bf16.msra.mxu0 0
        %687 = vmatpush.bf16.msra.mxu0 0
        %688 = vmatpush.bf16.msra.mxu0 0
        %689 = vmatpush.bf16.msra.mxu0 0
        %690 = vmatpush.bf16.msra.mxu0 0
        %691 = vmatpush.bf16.msra.mxu0 0
        %692 = vmatpush.bf16.msra.mxu0 %v667
        %693 = vmatmul.bf16.gmra.mxu0 %v661
        %v694 = vpop.f32.mrf.mxu0
        %v695 = vadd.f32 0.0, %v694
        %v696 = vpop.f32.mrf.mxu0
        %697 = vdwg.mxu0
        %698 = vmatpush.bf16.msra.mxu0 0
        %699 = vmatpush.bf16.msra.mxu0 0
        %700 = vmatpush.bf16.msra.mxu0 0
        %701 = vmatpush.bf16.msra.mxu0 0
        %702 = vmatpush.bf16.msra.mxu0 0
        %703 = vmatpush.bf16.msra.mxu0 0
        %704 = vmatpush.bf16.msra.mxu0 0
        %705 = vmatpush.bf16.msra.mxu0 %v670
        %706 = vmatmul.bf16.gmra.mxu0 %v661
        %v707 = vpop.f32.mrf.mxu0
        %v708 = vadd.f32 0.0, %v707
        %v709 = vpop.f32.mrf.mxu0
        %710 = vdwg.mxu0
        %v711 = vadd.f32 %v637, %v682
        %v712 = vadd.f32 %v638, %v695
        %v713 = vadd.f32 %v639, %v708
        %v714 = vld [vmem:[%s208] sm:$0x3f]
        %s715 = scalar_lea.vmem %s0, 28
        %v716 = vld [vmem:[%s715] sm:$0xf]
        %718 = vst [vmem:[#allocation1] ss:$4 sm:$0xff] %v714
        %v719 = vld.sshfl [vmem:[#allocation1] sm:$0xff pattern:$0x73625140]
        %v721 = vld.sshfl [vmem:[#allocation1 + $0x8] sm:$0xff pattern:$0x73625140]
        %v723 = vld.sshfl [vmem:[#allocation1 + $0x10] sm:$0xff pattern:$0x73625140]
        %725 = vrot.lane.b32.xlu0 %v719, 91
        %v726 = vpop.permute.xlu0 %725
        %727 = vrot.lane.b32.xlu0 %v721, 91
        %v728 = vpop.permute.xlu0 %727
        %729 = vrot.lane.b32.xlu0 %v723, 91
        %v730 = vpop.permute.xlu0 %729
        %vm731 = vcmask 744448
        %v732 = vsel %vm731, %v726, %v728
        %v733 = vsel %vm731, %v728, %v730
        %v735 = vsel %vm239, %v716, 0
        %v738 = vsel %vm243, %v732, 0
        %v741 = vsel %vm243, %v733, 0
        %v744 = vsel %vm243, %v730, 0
        %746 = vmatpush.bf16.msra.mxu0 0
        %747 = vmatpush.bf16.msra.mxu0 0
        %748 = vmatpush.bf16.msra.mxu0 0
        %749 = vmatpush.bf16.msra.mxu0 0
        %750 = vmatpush.bf16.msra.mxu0 0
        %751 = vmatpush.bf16.msra.mxu0 0
        %752 = vmatpush.bf16.msra.mxu0 0
        %753 = vmatpush.bf16.msra.mxu0 %v738
        %754 = vmatmul.bf16.gmra.mxu0 %v735
        %v755 = vpop.f32.mrf.mxu0
        %v756 = vadd.f32 0.0, %v755
        %v757 = vpop.f32.mrf.mxu0
        %758 = vdwg.mxu0
        %759 = vmatpush.bf16.msra.mxu0 0
        %760 = vmatpush.bf16.msra.mxu0 0
        %761 = vmatpush.bf16.msra.mxu0 0
        %762 = vmatpush.bf16.msra.mxu0 0
        %763 = vmatpush.bf16.msra.mxu0 0
        %764 = vmatpush.bf16.msra.mxu0 0
        %765 = vmatpush.bf16.msra.mxu0 0
        %766 = vmatpush.bf16.msra.mxu0 %v741
        %767 = vmatmul.bf16.gmra.mxu0 %v735
        %v768 = vpop.f32.mrf.mxu0
        %v769 = vadd.f32 0.0, %v768
        %v770 = vpop.f32.mrf.mxu0
        %771 = vdwg.mxu0
        %772 = vmatpush.bf16.msra.mxu0 0
        %773 = vmatpush.bf16.msra.mxu0 0
        %774 = vmatpush.bf16.msra.mxu0 0
        %775 = vmatpush.bf16.msra.mxu0 0
        %776 = vmatpush.bf16.msra.mxu0 0
        %777 = vmatpush.bf16.msra.mxu0 0
        %778 = vmatpush.bf16.msra.mxu0 0
        %779 = vmatpush.bf16.msra.mxu0 %v744
        %780 = vmatmul.bf16.gmra.mxu0 %v735
        %v781 = vpop.f32.mrf.mxu0
        %v782 = vadd.f32 0.0, %v781
        %v783 = vpop.f32.mrf.mxu0
        %784 = vdwg.mxu0
        %v785 = vadd.f32 %v711, %v756
        %v786 = vadd.f32 %v712, %v769
        %v787 = vadd.f32 %v713, %v782
        %v788 = vld [vmem:[%s208] sm:$0x3f]
        %s789 = scalar_lea.vmem %s0, 32
        %v790 = vld [vmem:[%s789] sm:$0xf]
        %792 = vst [vmem:[#allocation1] ss:$4 sm:$0xff] %v788
        %v793 = vld.sshfl [vmem:[#allocation1] sm:$0xff pattern:$0x73625140]
        %v795 = vld.sshfl [vmem:[#allocation1 + $0x8] sm:$0xff pattern:$0x73625140]
        %v797 = vld.sshfl [vmem:[#allocation1 + $0x10] sm:$0xff pattern:$0x73625140]
        %799 = vrot.lane.b32.xlu0 %v793, 90
        %v800 = vpop.permute.xlu0 %799
        %801 = vrot.lane.b32.xlu0 %v795, 90
        %v802 = vpop.permute.xlu0 %801
        %803 = vrot.lane.b32.xlu0 %v797, 90
        %v804 = vpop.permute.xlu0 %803
        %vm805 = vcmask 736256
        %v806 = vsel %vm805, %v800, %v802
        %v807 = vsel %vm805, %v802, %v804
        %v809 = vsel %vm239, %v790, 0
        %v812 = vsel %vm243, %v806, 0
        %v815 = vsel %vm243, %v807, 0
        %v818 = vsel %vm243, %v804, 0
        %820 = vmatpush.bf16.msra.mxu0 0
        %821 = vmatpush.bf16.msra.mxu0 0
        %822 = vmatpush.bf16.msra.mxu0 0
        %823 = vmatpush.bf16.msra.mxu0 0
        %824 = vmatpush.bf16.msra.mxu0 0
        %825 = vmatpush.bf16.msra.mxu0 0
        %826 = vmatpush.bf16.msra.mxu0 0
        %827 = vmatpush.bf16.msra.mxu0 %v812
        %828 = vmatmul.bf16.gmra.mxu0 %v809
        %v829 = vpop.f32.mrf.mxu0
        %v830 = vadd.f32 0.0, %v829
        %v831 = vpop.f32.mrf.mxu0
        %832 = vdwg.mxu0
        %833 = vmatpush.bf16.msra.mxu0 0
        %834 = vmatpush.bf16.msra.mxu0 0
        %835 = vmatpush.bf16.msra.mxu0 0
        %836 = vmatpush.bf16.msra.mxu0 0
        %837 = vmatpush.bf16.msra.mxu0 0
        %838 = vmatpush.bf16.msra.mxu0 0
        %839 = vmatpush.bf16.msra.mxu0 0
        %840 = vmatpush.bf16.msra.mxu0 %v815
        %841 = vmatmul.bf16.gmra.mxu0 %v809
        %v842 = vpop.f32.mrf.mxu0
        %v843 = vadd.f32 0.0, %v842
        %v844 = vpop.f32.mrf.mxu0
        %845 = vdwg.mxu0
        %846 = vmatpush.bf16.msra.mxu0 0
        %847 = vmatpush.bf16.msra.mxu0 0
        %848 = vmatpush.bf16.msra.mxu0 0
        %849 = vmatpush.bf16.msra.mxu0 0
        %850 = vmatpush.bf16.msra.mxu0 0
        %851 = vmatpush.bf16.msra.mxu0 0
        %852 = vmatpush.bf16.msra.mxu0 0
        %853 = vmatpush.bf16.msra.mxu0 %v818
        %854 = vmatmul.bf16.gmra.mxu0 %v809
        %v855 = vpop.f32.mrf.mxu0
        %v856 = vadd.f32 0.0, %v855
        %v857 = vpop.f32.mrf.mxu0
        %858 = vdwg.mxu0
        %v859 = vadd.f32 %v785, %v830
        %v860 = vadd.f32 %v786, %v843
        %v861 = vadd.f32 %v787, %v856
        %v862 = vpack.c.bf16 %v859, %v859
        %vm863 = vcmask 125952
        %864 = vst.msk [vmem:[%s191] sm:$0xf] %vm863, %v862
        %866 = vrot.lane.b32.xlu0 %v862, 126
        %v867 = vpop.permute.xlu0 %866
        %vm869 = vcmask 257152
        %870 = vst.msk [vmem:[%s191] sm:$0xf] %vm869, %v867
        %871 = vrot.lane.b32.xlu0 %v862, 124
        %v872 = vpop.permute.xlu0 %871
        %vm874 = vcmask 388352
        %875 = vst.msk [vmem:[%s191] sm:$0xf] %vm874, %v872
        %876 = vrot.lane.b32.xlu0 %v862, 122
        %v877 = vpop.permute.xlu0 %876
        %vm879 = vcmask 519552
        %880 = vst.msk [vmem:[%s191] sm:$0xf] %vm879, %v877
        %881 = vrot.lane.b32.xlu0 %v862, 120
        %v882 = vpop.permute.xlu0 %881
        %vm884 = vcmask 650752
        %885 = vst.msk [vmem:[%s191] sm:$0xf] %vm884, %v882
        %886 = vrot.lane.b32.xlu0 %v862, 118
        %v887 = vpop.permute.xlu0 %886
        %vm889 = vcmask 781952
        %890 = vst.msk [vmem:[%s191] sm:$0xf] %vm889, %v887
        %891 = vrot.lane.b32.xlu0 %v862, 116
        %v892 = vpop.permute.xlu0 %891
        %vm894 = vcmask 913152
        %895 = vst.msk [vmem:[%s191] sm:$0xf] %vm894, %v892
        %v896 = vpack.c.bf16 %v860, %v859
        %898 = vrot.lane.b32.xlu0 %v896, 114
        %v899 = vpop.permute.xlu0 %898
        %v900 = vrot.slane %v899, 4
        %vm901 = vcmask 932864
        %v902 = vsel %vm901, %v899, %v900
        %vm904 = vcmask 1044352
        %905 = vst.msk [vmem:[%s191] sm:$0xf] %vm904, %v902
        %v906 = vpack.c.bf16 %v860, %v860
        %908 = vrot.lane.b32.xlu0 %v906, 112
        %v909 = vpop.permute.xlu0 %908
        %911 = vst.msk [vmem:[%s191 + $0x4] sm:$0xf] %vm863, %v909
        %912 = vrot.lane.b32.xlu0 %v906, 110
        %v913 = vpop.permute.xlu0 %912
        %915 = vst.msk [vmem:[%s191 + $0x4] sm:$0xf] %vm869, %v913
        %916 = vrot.lane.b32.xlu0 %v906, 108
        %v917 = vpop.permute.xlu0 %916
        %919 = vst.msk [vmem:[%s191 + $0x4] sm:$0xf] %vm874, %v917
        %920 = vrot.lane.b32.xlu0 %v906, 106
        %v921 = vpop.permute.xlu0 %920
        %923 = vst.msk [vmem:[%s191 + $0x4] sm:$0xf] %vm879, %v921
        %924 = vrot.lane.b32.xlu0 %v906, 104
        %v925 = vpop.permute.xlu0 %924
        %927 = vst.msk [vmem:[%s191 + $0x4] sm:$0xf] %vm884, %v925
        %928 = vrot.lane.b32.xlu0 %v906, 102
        %v929 = vpop.permute.xlu0 %928
        %931 = vst.msk [vmem:[%s191 + $0x4] sm:$0xf] %vm889, %v929
        %v932 = vpack.c.bf16 %v861, %v860
        %934 = vrot.lane.b32.xlu0 %v932, 100
        %v935 = vpop.permute.xlu0 %934
        %v936 = vrot.slane %v935, 4
        %vm937 = vcmask 818176
        %v938 = vsel %vm937, %v935, %v936
        %940 = vst.msk [vmem:[%s191 + $0x4] sm:$0xf] %vm894, %v938
        %v941 = vpack.c.bf16 %v861, %v861
        %943 = vrot.lane.b32.xlu0 %v941, 98
        %v944 = vpop.permute.xlu0 %943
        %946 = vst.msk [vmem:[%s191 + $0x4] sm:$0xf] %vm904, %v944
        %v947 = vld [vmem:[%s191] sm:$0xff]
        %v948 = vunpack.c.l.bf16 %v947
        %v949 = vunpack.c.h.bf16 %v947
        %v950 = vadd.f32 %v948, %v949
        %951 = vadd.xlane.f32.xlu0 %v950
        %v952 = vpop.xlane.xlu0 %951
        %v953 = vmul.f32 %v952, 0.00390625
        %v954 = vsub.f32 %v948, %v953
        %v955 = vsub.f32 %v949, %v953
        %vm956 = vcmask 7168
        %957 = vst.msk [vmem:[%s212] sm:$0xff] %vm956, %v952
        %v958 = vmul.f32 %v954, %v954
        %v959 = vmul.f32 %v955, %v955
        %v960 = vadd.f32 %v958, %v959
        %961 = vadd.xlane.f32.xlu0 %v960
        %v962 = vpop.xlane.xlu0 %961
        %963 = vst.msk [vmem:[%s216] sm:$0xff] %vm956, %v962
        %s964 = sand.u32 %s74, 1
        %s965 = scalar_lea.sflag [#allocation3], %s964
        %s966 = sand.u32 %s74, 1
        %s967 = smul.addr %s966, 8
        %s968 = scalar_lea.vmem [#allocation2], %s967
        %p969 = scmp.lt.s32.totalorder %s19, 1
        %s970 = scalar_select %p969, %s19, 1
        %s971 = smul.addr %s970, 8
        %s972 = scalar_lea.vmem %s3, %s971
        %p973 = scmp.lt.s32.totalorder %s19, 1
        %s974 = scalar_select %p973, %s19, 1
        %s975 = smul.addr %s974, 8
        %s976 = scalar_lea.vmem %s4, %s975
        // Predicated region
        $region29: #{tpu_custom_call.1} parent=27 // pred_check
          %p977 = pneg %p84
        $region30: #{tpu_custom_call.1} parent=27 // pred_check_branch
          %979 = sbr.rel (%p977) target = $region32
        $region31: #{tpu_custom_call.1} parent=27 // pred_region
          %981 = vsyncadd %s965, 0
          %s982 = smul.addr %s19, 2
          %s983 = smul.addr %s982, 4
          %s984 = scalar_lea.hbm %s2, %s983
          %s986 = sshll.u32 %s968, 4
          %s987 = int_to_ptr.vmem [resolvable:$true] %s986
          %s988 = sshll.u32 %s984, 4
          %s989 = int_to_ptr.hbm [resolvable:$true] %s988
          %991 = dma.vmem_to_hbm [thread:$0]  %s987, 128, %s989, %s965
        $region32: #{tpu_custom_call.1} parent=27 // pred_fallthru
          _
        // Predicated region
        $region33: #{tpu_custom_call.1} parent=27 // pred_check
          %p992 = pneg %p110
        $region34: #{tpu_custom_call.1} parent=27 // pred_check_branch
          %994 = sbr.rel (%p992) target = $region36
        $region35: #{tpu_custom_call.1} parent=27 // pred_region
          _
        $region36: #{tpu_custom_call.1} parent=27 // pred_fallthru
          _
        // Predicated region
        $region37: #{tpu_custom_call.1} parent=27 // pred_check
          %p995 = pneg %p136
        $region38: #{tpu_custom_call.1} parent=27 // pred_check_branch
          %997 = sbr.rel (%p995) target = $region40
        $region39: #{tpu_custom_call.1} parent=27 // pred_region
          _
        $region40: #{tpu_custom_call.1} parent=27 // pred_fallthru
          _
      $region28: #{tpu_custom_call.1} parent=5 // pred_fallthru
        _
      %p998 = scmp.le.s32.totalorder 2, %s14
      // Predicated region
      $region41: #{tpu_custom_call.1} parent=5 // pred_check
        %p999 = pneg %p998
      $region42: #{tpu_custom_call.1} parent=5 // pred_check_branch
        %1001 = sbr.rel (%p999) target = $region44
      $region43: #{tpu_custom_call.1} parent=5 // pred_region
        %s1002 = ssub.s32 %s14, 2
        // Predicated region
        $region45: #{tpu_custom_call.1} parent=43 // pred_check
          %p1003 = pneg %p90
        $region46: #{tpu_custom_call.1} parent=43 // pred_check_branch
          %1005 = sbr.rel (%p1003) target = $region48
        $region47: #{tpu_custom_call.1} parent=43 // pred_region
          %s1006 = sand.u32 %s75, 1
          %s1007 = scalar_lea.sflag [#allocation3], %s1006
          %s1008 = sand.u32 %s75, 1
          %s1009 = smul.addr %s1008, 8
          %s1010 = scalar_lea.vmem [#allocation2], %s1009
          %1012 = dma.done %s1007, 128
        $region48: #{tpu_custom_call.1} parent=43 // pred_fallthru
          _
        // Predicated region
        $region49: #{tpu_custom_call.1} parent=43 // pred_check
          %p1013 = pneg %p116
        $region50: #{tpu_custom_call.1} parent=43 // pred_check_branch
          %1015 = sbr.rel (%p1013) target = $region52
        $region51: #{tpu_custom_call.1} parent=43 // pred_region
          %p1016 = scmp.lt.s32.totalorder %s20, 1
          %s1017 = scalar_select %p1016, %s20, 1
          %s1018 = smul.addr %s1017, 8
          %s1019 = scalar_lea.vmem %s3, %s1018
        $region52: #{tpu_custom_call.1} parent=43 // pred_fallthru
          _
        // Predicated region
        $region53: #{tpu_custom_call.1} parent=43 // pred_check
          %p1020 = pneg %p142
        $region54: #{tpu_custom_call.1} parent=43 // pred_check_branch
          %1022 = sbr.rel (%p1020) target = $region56
        $region55: #{tpu_custom_call.1} parent=43 // pred_region
          %p1023 = scmp.lt.s32.totalorder %s20, 1
          %s1024 = scalar_select %p1023, %s20, 1
          %s1025 = smul.addr %s1024, 8
          %s1026 = scalar_lea.vmem %s4, %s1025
        $region56: #{tpu_custom_call.1} parent=43 // pred_fallthru
          _
      $region44: #{tpu_custom_call.1} parent=5 // pred_fallthru
        _
    $region6: #{tpu_custom_call.1} parent=1 // loop_footer
      %s18 = sadd.s32 1, %s14
    $region7: #{tpu_custom_call.1} parent=1 // loop_footer_branch
      %13 = sbr.rel target = $region3
    $region8: #{tpu_custom_call.1} parent=1 // loop_exit
      _
    %1027 = vsyncpa [#allocation3], 1
    %s1028 = scalar_lea.sflag [#allocation3], 1
    %1029 = vsyncpa %s1028, 1

</llo_original>
